<compile_context>
chip_gen: v7x
topology: tpu7x:2x2x1
jax: 0.10.0
libtpu: 0.0.40
codegen_flags: <defaults>
</compile_context>

<pallas_src>
import jax
import jax.numpy as jnp
import numpy as np
from jax import lax
from jax.experimental import pallas as pl
from jax.experimental.pallas import tpu as pltpu


def _round_up(v, m):
    return (v + m - 1) // m * m


def _size_norm_kernel(scale_ref, x_ref, o_ref):
    # scale_ref: (fold, bm) f32 -- scale_ref[k, m] is 1/sqrt(deg) of the original
    #            row m*fold + k of this tile (lane-dense, transposed layout).
    # x_ref/o_ref: (bm, bf) in x.dtype, bf = fold * F (lane-dense when folded).
    bm, bf = x_ref.shape
    fold = scale_ref.shape[0]
    sub_f = bf // fold                      # original feature width F (== bf if fold==1)

    # One-hot expansion on the MXU (the extended/MXU slot is otherwise idle):
    #   E[k, l] = 1.0 iff lane l belongs to packed row k  (compile-time constant,
    #   built without integer division -> plain compares on an iota)
    lane = lax.broadcasted_iota(jnp.int32, (fold, bf), 1)
    row = lax.broadcasted_iota(jnp.int32, (fold, bf), 0)
    lo = row * sub_f
    e = ((lane >= lo) & (lane < lo + sub_f)).astype(jnp.float32)

    #   s_full[m, l] = sum_k scale[k, m] * E[k, l]   (== scale of packed lane l)
    # Contracting on axis 0 of both operands == scale^T @ E (no explicit transpose).
    # HIGHEST precision -> fp32 contraction, so the one-hot "gather" is exact.
    s_full = lax.dot_general(
        scale_ref[...], e,
        dimension_numbers=(((0,), (0,)), ((), ())),
        precision=jax.lax.Precision.HIGHEST,
        preferred_element_type=jnp.float32,
    )                                        # (bm, bf) f32

    # Multiply in f32, cast once (matches the f32-scale reference; avoids double
    # rounding when x is bf16).
    o_ref[...] = (x_ref[...].astype(jnp.float32) * s_full).astype(o_ref.dtype)


def size_norm(x, batch=None, num_graphs=None, *,
              block_bytes=2 * 1024 * 1024,
              split_bytes=2 * 1024 * 1024,
              donate_x=False):
    """out[i] = x[i] / sqrt(#nodes in graph batch[i]); batch=None => one graph."""
    n, f = x.shape
    if batch is None:
        batch = jnp.zeros((n,), dtype=jnp.int32)
        num_graphs = 1
    else:
        batch = batch.astype(jnp.int32)
        if num_graphs is None:
            # No host round-trip here (breaks under jit); caller supplies a
            # static graph count (an upper bound is fine -- empty ids never get
            # gathered, so their rsqrt(0)=inf is never used).
            raise ValueError("size_norm requires a static `num_graphs` "
                             "(or upper bound) when `batch` is given.")

    # ---- O(N) XLA prologue: per-row scale, hoisted out of the Pallas grid. ---
    deg = jax.ops.segment_sum(jnp.ones((n,), jnp.float32), batch,
                              num_segments=num_graphs)
    scale = lax.rsqrt(deg)[batch]                       # (N,) f32

    itemsize = jnp.dtype(x.dtype).itemsize

    # ---- lane-dense row folding: pack `fold` rows into one 128-lane row. -----
    fold = 128 // f if (f < 128 and 128 % f == 0) else 1
    fw = fold * f

    n1 = _round_up(n, fold)
    x_p, scale_p = x, scale
    if n1 != n:
        # At most fold-1 (< 128) pad rows, only when N is not fold-aligned.
        # TODO(synk): route the < fold-row remainder through a tiny unfolded
        # tail kernel to avoid this O(N*F) pad copy for fold-misaligned N.
        x_p = jnp.pad(x, ((0, n1 - n), (0, 0)))
        scale_p = jnp.pad(scale, (0, n1 - n))
    rr = n1 // fold

    x2 = x_p.reshape(rr, fw)                # contiguous (bitcast-able) reshape
    s2 = scale_p.reshape(rr, fold).T        # (fold, rr): lane-dense scale, O(N) bytes

    # ---- feature (lane) tiling for very wide rows (only possible if fold==1). -
    if fw > 128 and 128 * fw * itemsize > block_bytes:
        bf = min(fw, max(128, (block_bytes // (128 * itemsize)) // 128 * 128))
    else:
        bf = fw

    # ---- row tiling.  No bm-divisibility padding: ragged last block is fine. -
    # When bm < rr it is a multiple of 128 so the transposed-scale block's lane
    # dim stays layout-legal; 128 also covers every packed sublane count
    # (8 for f32, 16 for bf16, 32 for int8/fp8).
    bm_cap = max(128, (block_bytes // (bf * itemsize)) // 128 * 128)
    if rr <= bm_cap:
        bm = rr                             # full-dim block: always layout-legal
        if rr * fw * itemsize > split_bytes:
            # v7x megacore: give both TensorCores work for mid-size inputs.
            half = _round_up(-(-rr // 2), 128)
            if half < rr:
                bm = half
    else:
        bm = bm_cap

    gm = pl.cdiv(rr, bm)
    gf = pl.cdiv(fw, bf)

    out2 = pl.pallas_call(
        _size_norm_kernel,
        out_shape=jax.ShapeDtypeStruct((rr, fw), x.dtype),
        grid_spec=pltpu.PrefetchScalarGridSpec(
            num_scalar_prefetch=0,
            grid=(gm, gf),
            in_specs=[
                pl.BlockSpec((fold, bm), lambda i, j: (0, i)),   # lane-dense scale
                pl.BlockSpec((bm, bf), lambda i, j: (i, j)),     # x tile
            ],
            out_specs=pl.BlockSpec((bm, bf), lambda i, j: (i, j)),
        ),
        compiler_params=pltpu.CompilerParams(
            dimension_semantics=("parallel", "parallel"),
            vmem_limit_bytes=32 * 1024 * 1024,
        ),
        # Optional: reuse x's HBM buffer for the output when the caller donates x.
        input_output_aliases=({1: 0} if donate_x else {}),
    )(s2, x2)

    out = out2.reshape(n1, f)
    if n1 != n:
        out = out[:n]
    return out


def _size_norm_ref(x, batch, num_graphs):
    deg = jax.ops.segment_sum(jnp.ones((x.shape[0],), jnp.float32), batch,
                              num_segments=num_graphs)
    inv = lax.rsqrt(deg)[batch][:, None]
    return (x.astype(jnp.float32) * inv).astype(x.dtype)


def _check(out, ref, rtol, atol):
    np.testing.assert_allclose(np.asarray(out).astype(np.float32),
                               np.asarray(ref).astype(np.float32),
                               rtol=rtol, atol=atol)


if __name__ == "__main__":
    key = jax.random.PRNGKey(0)
    k1, k2, k3, k4, k5, k6 = jax.random.split(key, 6)
    # Conservative tolerances: with fp32 contraction the kernel matches the
    # reference to ~1e-6; the looser bound also covers any bf16-pass fallback.
    RTOL, ATOL = 5e-3, 1e-5

    # 1) explicit batch, F=32 -> fold=4 lane-dense path, single block.
    N, F, G = 32, 32, 3
    x = jax.random.normal(k1, (N, F), dtype=jnp.float32)
    batch = jnp.asarray([0] * 10 + [1] * 12 + [2] * 10, dtype=jnp.int32)
    out = jax.block_until_ready(size_norm(x, batch, num_graphs=G))
    _check(out, _size_norm_ref(x, batch, G), RTOL, ATOL)

    # 2) batch=None -> single graph, out = x / sqrt(N).
    out0 = jax.block_until_ready(size_norm(x, None))
    _check(out0, np.asarray(x) / np.sqrt(np.float32(N)), RTOL, ATOL)

    # 3) multi-row-tile grid with a ragged last block (600 % fold == 0, no pad).
    N3, F3, G3 = 600, 32, 4
    x3 = jax.random.normal(k2, (N3, F3), dtype=jnp.float32)
    batch3 = jax.random.randint(k3, (N3,), 0, G3).astype(jnp.int32)
    out3 = jax.block_until_ready(
        size_norm(x3, batch3, num_graphs=G3, block_bytes=64 * 1024))
    _check(out3, _size_norm_ref(x3, batch3, G3), RTOL, ATOL)

    # 4) N not a multiple of fold -> small (<fold rows) fold-alignment pad path.
    N4, F4, G4 = 34, 32, 2
    x4 = jax.random.normal(k4, (N4, F4), dtype=jnp.float32)
    batch4 = jnp.asarray([0] * 15 + [1] * 19, dtype=jnp.int32)
    out4 = jax.block_until_ready(size_norm(x4, batch4, num_graphs=G4))
    _check(out4, _size_norm_ref(x4, batch4, G4), RTOL, ATOL)

    # 5) F=128 (fold == 1) with bf16 input.
    N5, F5, G5 = 24, 128, 2
    x5 = jax.random.normal(k5, (N5, F5), dtype=jnp.float32).astype(jnp.bfloat16)
    batch5 = jnp.asarray([0] * 10 + [1] * 14, dtype=jnp.int32)
    out5 = jax.block_until_ready(size_norm(x5, batch5, num_graphs=G5))
    _check(out5, _size_norm_ref(x5, batch5, G5), 1e-2, 1e-2)

    # 6) wide F -> 2-D grid with a feature (lane) axis.
    N6, F6, G6 = 32, 512, 2
    x6 = jax.random.normal(k6, (N6, F6), dtype=jnp.float32)
    batch6 = jnp.asarray([0] * 20 + [1] * 12, dtype=jnp.int32)
    out6 = jax.block_until_ready(
        size_norm(x6, batch6, num_graphs=G6, block_bytes=128 * 1024))
    _check(out6, _size_norm_ref(x6, batch6, G6), RTOL, ATOL)

    # 7) v7x megacore split branch (>=2 row steps for a single-tile-size input;
    #    small split threshold so the path is exercised at a small shape).
    N7, F7, G7 = 1536, 32, 3
    x7 = jax.random.normal(k1, (N7, F7), dtype=jnp.float32)
    batch7 = jax.random.randint(k2, (N7,), 0, G7).astype(jnp.int32)
    out7 = jax.block_until_ready(
        size_norm(x7, batch7, num_graphs=G7, split_bytes=64 * 1024))
    _check(out7, _size_norm_ref(x7, batch7, G7), RTOL, ATOL)

    print("KERNEL_OK")
</pallas_src>

<mosaic_0001>
module attributes {stable_mosaic.version = 11 : i64} {
  func.func @_size_norm_kernel(%arg0: i32, %arg1: i32, %arg2: memref<4x8xf32, #tpu.memory_space<vmem>>, %arg3: memref<8x128xf32, #tpu.memory_space<vmem>>, %arg4: memref<8x128xf32, #tpu.memory_space<vmem>>) attributes {dimension_semantics = [#tpu.dimension_semantics<parallel>, #tpu.dimension_semantics<parallel>], iteration_bounds = array<i64: 1, 1>, scalar_prefetch = 0 : i64, scratch_operands = 0 : i64, tpu.core_type = #tpu.core_type<tc>, window_params = [{transform_indices = @transform_0, window_bounds = array<i64: 4, 8>}, {transform_indices = @transform_1, window_bounds = array<i64: 8, 128>}, {transform_indices = @transform_2, window_bounds = array<i64: 8, 128>}]} {
    %0 = tpu.iota {dimensions = array<i32: 1>} : vector<4x128xi32>
    %1 = tpu.iota {dimensions = array<i32: 0>} : vector<4x128xi32>
    %c32_i32 = arith.constant 32 : i32
    %2 = vector.broadcast %c32_i32 : i32 to vector<4x128xi32>
    %3 = arith.muli %1, %2 : vector<4x128xi32>
    %4 = arith.cmpi sge, %0, %3 : vector<4x128xi32>
    %c32_i32_0 = arith.constant 32 : i32
    %5 = vector.broadcast %c32_i32_0 : i32 to vector<4x128xi32>
    %6 = arith.addi %3, %5 : vector<4x128xi32>
    %7 = arith.cmpi slt, %0, %6 : vector<4x128xi32>
    %8 = arith.andi %4, %7 : vector<4x128xi1>
    %9 = arith.extui %8 : vector<4x128xi1> to vector<4x128xi32>
    %10 = arith.sitofp %9 : vector<4x128xi32> to vector<4x128xf32>
    %c0 = arith.constant 0 : index
    %c0_1 = arith.constant 0 : index
    %11 = vector.load %arg2[%c0, %c0_1] : memref<4x8xf32, #tpu.memory_space<vmem>>, vector<4x8xf32>
    %cst = arith.constant dense<0.000000e+00> : vector<8x128xf32>
    %12 = tpu.matmul %11, %10, %cst {dimension_numbers = #tpu.dot_dimension_numbers<[0], [0], [1], [1], [0, 1, 1, 1], [], []>, precision = #tpu.contract_precision<fp32>} : vector<4x8xf32>, vector<4x128xf32>, vector<8x128xf32> -> vector<8x128xf32>
    %c0_2 = arith.constant 0 : index
    %c0_3 = arith.constant 0 : index
    %13 = vector.load %arg3[%c0_2, %c0_3] : memref<8x128xf32, #tpu.memory_space<vmem>>, vector<8x128xf32>
    %14 = arith.mulf %13, %12 : vector<8x128xf32>
    %c0_4 = arith.constant 0 : index
    %c0_5 = arith.constant 0 : index
    %15 = vector.load %arg4[%c0_4, %c0_5] : memref<8x128xf32, #tpu.memory_space<vmem>>, vector<8x128xf32>
    tpu.vector_store %arg4[%c0_4, %c0_5], %14 {strides = array<i32>} : memref<8x128xf32, #tpu.memory_space<vmem>>, vector<8x128xf32>,
    return
  }
  func.func @transform_0(%arg0: i32, %arg1: i32) -> (i32, i32) {
    %c0_i32 = arith.constant 0 : i32
    %c0_i32_0 = arith.constant 0 : i32
    return %c0_i32, %arg0 : i32, i32
  }
  func.func @transform_1(%arg0: i32, %arg1: i32) -> (i32, i32) {
    %c0_i32 = arith.constant 0 : i32
    return %arg0, %arg1 : i32, i32
  }
  func.func @transform_2(%arg0: i32, %arg1: i32) -> (i32, i32) {
    %c0_i32 = arith.constant 0 : i32
    return %arg0, %arg1 : i32, i32
  }
}

</mosaic_0001>

<llo_original>
// kernel: tpu_custom_call.1
$region0: #{tpu_custom_call.1}
  #allocation0 [shape = 'u32[]', space=smem, size = 0x4, offset = 0x4, fixed_abs, tag = 'smem constant byte address 0x4 - core index']
  #allocation1 [shape = 'u32[144,128]{1,0:T(1,128)}', space=vmem, size = 0x12000, scoped, tag = 'internal scratch']
  %s0 = inlined_call_operand.hbm [shape: f32[4,8], index: 0, kind: input, shape index: {}]
  %s1 = inlined_call_operand.hbm [shape: f32[8,128], index: 1, kind: input, shape index: {}]
  %s2 = inlined_call_operand.hbm [shape: f32[8,128], index: 2, kind: output, shape index: {}]
  %s3 = sld [smem:[#allocation0]]
  $region26: #{tpu_custom_call.1} parent=0
    _
  %s5 = ssub.s32 1, %s3
  %s6 = scalar_select 0, %s5, %s3
  $region1: #{tpu_custom_call.1} parent=0
    #allocation2 [shape = 'u8[2048]{0}', space=vmem, size = 0x800, scoped, tag = 'input window, operand 0, single buffered']
    #allocation3 [shape = 's32[1]{0}', space=sflag, size = 0x4, scoped, tag = 'scoped memory for tpu_custom_call.1']
    #allocation4 [shape = 's32[1]{0}', space=sflag, size = 0x4, scoped, tag = 'scoped memory for tpu_custom_call.1']
    #allocation5 [shape = 'u8[4096]{0}', space=vmem, size = 0x1000, scoped, tag = 'input window, operand 1, single buffered']
    #allocation6 [shape = 's32[1]{0}', space=sflag, size = 0x4, scoped, tag = 'scoped memory for tpu_custom_call.1']
    #allocation7 [shape = 'u8[4096]{0}', space=vmem, size = 0x1000, scoped, tag = 'output window, operand 0, single buffered']
    %7 = vsyncpa [#allocation3], 0
    %8 = vsyncpa [#allocation6], 0
    %9 = vsyncpa [#allocation4], 0
    // Predicated region
    $region2: #{tpu_custom_call.1} parent=1 // pred_check
      _
    $region3: #{tpu_custom_call.1} parent=1 // pred_check_branch
      %11 = sbr.rel (0) target = $region5
    $region4: #{tpu_custom_call.1} parent=1 // pred_region
      %s13 = ssub.s32 64, 64
      %14 = vsyncadd [#allocation3], %s13
      %s16 = sshll.u32 [#allocation2], 4
      %s17 = int_to_ptr.vmem [resolvable:$true] %s16
      %19 = dma.hbm_to_vmem [thread:$0]  %s0, 64, %s17, [#allocation3]
    $region5: #{tpu_custom_call.1} parent=1 // pred_fallthru
      _
    // Predicated region
    $region6: #{tpu_custom_call.1} parent=1 // pred_check
      _
    $region7: #{tpu_custom_call.1} parent=1 // pred_check_branch
      %21 = sbr.rel (0) target = $region9
    $region8: #{tpu_custom_call.1} parent=1 // pred_region
      %s23 = ssub.s32 128, 128
      %24 = vsyncadd [#allocation6], %s23
      %s26 = sshll.u32 [#allocation5], 4
      %s27 = int_to_ptr.vmem [resolvable:$true] %s26
      %29 = dma.hbm_to_vmem [thread:$0]  %s1, 128, %s27, [#allocation6]
    $region9: #{tpu_custom_call.1} parent=1 // pred_fallthru
      _
    // Predicated region
    $region10: #{tpu_custom_call.1} parent=1 // pred_check
      _
    $region11: #{tpu_custom_call.1} parent=1 // pred_check_branch
      %31 = sbr.rel (0) target = $region13
    $region12: #{tpu_custom_call.1} parent=1 // pred_region
      %32 = dma.done [#allocation3], 64
    $region13: #{tpu_custom_call.1} parent=1 // pred_fallthru
      _
    // Predicated region
    $region14: #{tpu_custom_call.1} parent=1 // pred_check
      _
    $region15: #{tpu_custom_call.1} parent=1 // pred_check_branch
      %34 = sbr.rel (0) target = $region17
    $region16: #{tpu_custom_call.1} parent=1 // pred_region
      %35 = dma.done [#allocation6], 128
    $region17: #{tpu_custom_call.1} parent=1 // pred_fallthru
      _
    %v36 = vlaneseq
    %v37 = vand.u32 %v36, 127
    %v38 = vlaneseq
    %v39 = vshrl.u32 %v38, 7
    %v40 = vmul.u32 %v39, 32
    %vm41 = vcmp.ge.s32.totalorder %v37, %v40
    %v42 = vadd.s32 %v40, 32
    %vm43 = vcmp.lt.s32.totalorder %v37, %v42
    %vm44 = vmand %vm41, %vm43
    %v45 = vsel %vm44, 1, 0
    %v46 = vcvt.s32.f32 %v45
    %v47 = vld [vmem:[#allocation2] sm:$0xf]
    %48 = vxpose.xlu0.b32.start [1/16] %v47, 128
    %49 = vxpose.xlu0.b32.cont [2/16] 0.0, 128
    %50 = vxpose.xlu0.b32.cont [3/16] 0.0, 128
    %51 = vxpose.xlu0.b32.cont [4/16] 0.0, 128
    %52 = vxpose.xlu0.b32.cont [5/16] 0.0, 128
    %53 = vxpose.xlu0.b32.cont [6/16] 0.0, 128
    %54 = vxpose.xlu0.b32.cont [7/16] 0.0, 128
    %55 = vxpose.xlu0.b32.cont [8/16] 0.0, 128
    %56 = vxpose.xlu0.b32.cont [9/16] 0.0, 128
    %57 = vxpose.xlu0.b32.cont [10/16] 0.0, 128
    %58 = vxpose.xlu0.b32.cont [11/16] 0.0, 128
    %59 = vxpose.xlu0.b32.cont [12/16] 0.0, 128
    %60 = vxpose.xlu0.b32.cont [13/16] 0.0, 128
    %61 = vxpose.xlu0.b32.cont [14/16] 0.0, 128
    %62 = vxpose.xlu0.b32.cont [15/16] 0.0, 128
    %63 = vxpose.xlu0.b32.end [16/16] 0.0, 128
    %v64 = vpop.trf.xlu0
    %v65 = vpop.trf.xlu0
    %v66 = vpop.trf.xlu0
    %v67 = vpop.trf.xlu0
    %v68 = vpop.trf.xlu0
    %v69 = vpop.trf.xlu0
    %v70 = vpop.trf.xlu0
    %v71 = vpop.trf.xlu0
    %v72 = vpop.trf.xlu0
    %v73 = vpop.trf.xlu0
    %v74 = vpop.trf.xlu0
    %v75 = vpop.trf.xlu0
    %v76 = vpop.trf.xlu0
    %v77 = vpop.trf.xlu0
    %v78 = vpop.trf.xlu0
    %v79 = vpop.trf.xlu0
    %vm80 = vcmask 31744
    %v82 = vsel %vm80, %v64, 0
    %vm84 = vcmask 1043456
    %v86 = vsel %vm84, %v46, 0
    %88 = vmatprep.subr.mxu0 0.0
    %v89 = vand.u32 %v86, 4294901760
    %90 = vmatpush1.msra.mxu0 %v89
    %91 = vmatprep.subr.mxu0 0.0
    %92 = vmatpush1.msra.mxu0 0.0
    %93 = vmatprep.subr.mxu0 0.0
    %94 = vmatpush1.msra.mxu0 0.0
    %95 = vmatprep.subr.mxu0 0.0
    %96 = vmatpush1.msra.mxu0 0.0
    %97 = vmatprep.subr.mxu0 0.0
    %98 = vmatpush1.msra.mxu0 0.0
    %99 = vmatprep.subr.mxu0 0.0
    %100 = vmatpush1.msra.mxu0 0.0
    %101 = vmatprep.subr.mxu0 0.0
    %102 = vmatpush1.msra.mxu0 0.0
    %103 = vmatprep.subr.mxu0 0.0
    %104 = vmatpush1.msra.mxu0 0.0
    %105 = vmatprep.subr.mxu0 0.0
    %106 = vmatpush1.msra.mxu0 0.0
    %107 = vmatprep.subr.mxu0 0.0
    %108 = vmatpush1.msra.mxu0 0.0
    %109 = vmatprep.subr.mxu0 0.0
    %110 = vmatpush1.msra.mxu0 0.0
    %111 = vmatprep.subr.mxu0 0.0
    %112 = vmatpush1.msra.mxu0 0.0
    %113 = vmatprep.subr.mxu0 0.0
    %114 = vmatpush1.msra.mxu0 0.0
    %115 = vmatprep.subr.mxu0 0.0
    %116 = vmatpush1.msra.mxu0 0.0
    %117 = vmatprep.subr.mxu0 0.0
    %118 = vmatpush1.msra.mxu0 0.0
    %119 = vmatprep.subr.mxu0 0.0
    %120 = vmatpush1.msra.mxu0 0.0
    %121 = vmatprep.subr.mxu0 0.0
    %122 = vmatpush1.msra.mxu0 0.0
    %123 = vmatprep.subr.mxu0 0.0
    %124 = vmatpush1.msra.mxu0 0.0
    %125 = vmatprep.subr.mxu0 0.0
    %126 = vmatpush1.msra.mxu0 0.0
    %127 = vmatprep.subr.mxu0 0.0
    %128 = vmatpush1.msra.mxu0 0.0
    %129 = vmatprep.subr.mxu0 0.0
    %130 = vmatpush1.msra.mxu0 0.0
    %131 = vmatprep.subr.mxu0 0.0
    %132 = vmatpush1.msra.mxu0 0.0
    %133 = vmatprep.subr.mxu0 0.0
    %134 = vmatpush1.msra.mxu0 0.0
    %135 = vmatprep.subr.mxu0 0.0
    %136 = vmatpush1.msra.mxu0 0.0
    %137 = vmatprep.subr.mxu0 0.0
    %138 = vmatpush1.msra.mxu0 0.0
    %139 = vmatprep.subr.mxu0 0.0
    %140 = vmatpush1.msra.mxu0 0.0
    %141 = vmatprep.subr.mxu0 0.0
    %142 = vmatpush1.msra.mxu0 0.0
    %143 = vmatprep.subr.mxu0 0.0
    %144 = vmatpush1.msra.mxu0 0.0
    %145 = vmatprep.subr.mxu0 0.0
    %146 = vmatpush1.msra.mxu0 0.0
    %147 = vmatprep.subr.mxu0 0.0
    %148 = vmatpush1.msra.mxu0 0.0
    %149 = vmatprep.subr.mxu0 0.0
    %150 = vmatpush1.msra.mxu0 0.0
    %151 = vmatprep.subr.mxu0 0.0
    %152 = vmatpush1.msra.mxu0 0.0
    %153 = vmatprep.mubr.f32.mxu0 0.0
    %v154 = vand.u32 %v82, 4294901760
    %v155 = vsub.f32 %v82, %v154
    %v156 = vand.u32 %v155, 4294901760
    %v157 = vsub.f32 %v155, %v156
    %v158 = vand.u32 %v157, 4294901760
    %159 = vmatmul.mubr.f32.gmra.mrb[0].mxu0 %v158
    %v160 = vpop.f32.mrb[0].mxu0
    %v161 = vadd.f32 0.0, %v160
    %v162 = vpop.f32.mrb[0].mxu0
    %163 = vdwg.mxu0
    %164 = vmatprep.subr.mxu0 0.0
    %v165 = vand.u32 %v86, 4294901760
    %v166 = vsub.f32 %v86, %v165
    %v167 = vand.u32 %v166, 4294901760
    %v168 = vsub.f32 %v166, %v167
    %v169 = vand.u32 %v168, 4294901760
    %170 = vmatpush1.msra.mxu0 %v169
    %171 = vmatprep.subr.mxu0 0.0
    %172 = vmatpush1.msra.mxu0 0.0
    %173 = vmatprep.subr.mxu0 0.0
    %174 = vmatpush1.msra.mxu0 0.0
    %175 = vmatprep.subr.mxu0 0.0
    %176 = vmatpush1.msra.mxu0 0.0
    %177 = vmatprep.subr.mxu0 0.0
    %178 = vmatpush1.msra.mxu0 0.0
    %179 = vmatprep.subr.mxu0 0.0
    %180 = vmatpush1.msra.mxu0 0.0
    %181 = vmatprep.subr.mxu0 0.0
    %182 = vmatpush1.msra.mxu0 0.0
    %183 = vmatprep.subr.mxu0 0.0
    %184 = vmatpush1.msra.mxu0 0.0
    %185 = vmatprep.subr.mxu0 0.0
    %186 = vmatpush1.msra.mxu0 0.0
    %187 = vmatprep.subr.mxu0 0.0
    %188 = vmatpush1.msra.mxu0 0.0
    %189 = vmatprep.subr.mxu0 0.0
    %190 = vmatpush1.msra.mxu0 0.0
    %191 = vmatprep.subr.mxu0 0.0
    %192 = vmatpush1.msra.mxu0 0.0
    %193 = vmatprep.subr.mxu0 0.0
    %194 = vmatpush1.msra.mxu0 0.0
    %195 = vmatprep.subr.mxu0 0.0
    %196 = vmatpush1.msra.mxu0 0.0
    %197 = vmatprep.subr.mxu0 0.0
    %198 = vmatpush1.msra.mxu0 0.0
    %199 = vmatprep.subr.mxu0 0.0
    %200 = vmatpush1.msra.mxu0 0.0
    %201 = vmatprep.subr.mxu0 0.0
    %202 = vmatpush1.msra.mxu0 0.0
    %203 = vmatprep.subr.mxu0 0.0
    %204 = vmatpush1.msra.mxu0 0.0
    %205 = vmatprep.subr.mxu0 0.0
    %206 = vmatpush1.msra.mxu0 0.0
    %207 = vmatprep.subr.mxu0 0.0
    %208 = vmatpush1.msra.mxu0 0.0
    %209 = vmatprep.subr.mxu0 0.0
    %210 = vmatpush1.msra.mxu0 0.0
    %211 = vmatprep.subr.mxu0 0.0
    %212 = vmatpush1.msra.mxu0 0.0
    %213 = vmatprep.subr.mxu0 0.0
    %214 = vmatpush1.msra.mxu0 0.0
    %215 = vmatprep.subr.mxu0 0.0
    %216 = vmatpush1.msra.mxu0 0.0
    %217 = vmatprep.subr.mxu0 0.0
    %218 = vmatpush1.msra.mxu0 0.0
    %219 = vmatprep.subr.mxu0 0.0
    %220 = vmatpush1.msra.mxu0 0.0
    %221 = vmatprep.subr.mxu0 0.0
    %222 = vmatpush1.msra.mxu0 0.0
    %223 = vmatprep.subr.mxu0 0.0
    %224 = vmatpush1.msra.mxu0 0.0
    %225 = vmatprep.subr.mxu0 0.0
    %226 = vmatpush1.msra.mxu0 0.0
    %227 = vmatprep.subr.mxu0 0.0
    %228 = vmatpush1.msra.mxu0 0.0
    %229 = vmatprep.subr.mxu0 0.0
    %230 = vmatpush1.msra.mxu0 0.0
    %231 = vmatprep.subr.mxu0 0.0
    %232 = vmatpush1.msra.mxu0 0.0
    %233 = vmatprep.mubr.f32.mxu0 0.0
    %v234 = vand.u32 %v82, 4294901760
    %235 = vmatmul.mubr.f32.gmra.mrb[0].mxu0 %v234
    %v236 = vpop.f32.mrb[0].mxu0
    %v237 = vadd.f32 %v161, %v236
    %v238 = vpop.f32.mrb[0].mxu0
    %239 = vdwg.mxu0
    %240 = vmatprep.subr.mxu0 0.0
    %v241 = vand.u32 %v86, 4294901760
    %v242 = vsub.f32 %v86, %v241
    %243 = vmatpush1.msra.mxu0 %v242
    %244 = vmatprep.subr.mxu0 0.0
    %245 = vmatpush1.msra.mxu0 0.0
    %246 = vmatprep.subr.mxu0 0.0
    %247 = vmatpush1.msra.mxu0 0.0
    %248 = vmatprep.subr.mxu0 0.0
    %249 = vmatpush1.msra.mxu0 0.0
    %250 = vmatprep.subr.mxu0 0.0
    %251 = vmatpush1.msra.mxu0 0.0
    %252 = vmatprep.subr.mxu0 0.0
    %253 = vmatpush1.msra.mxu0 0.0
    %254 = vmatprep.subr.mxu0 0.0
    %255 = vmatpush1.msra.mxu0 0.0
    %256 = vmatprep.subr.mxu0 0.0
    %257 = vmatpush1.msra.mxu0 0.0
    %258 = vmatprep.subr.mxu0 0.0
    %259 = vmatpush1.msra.mxu0 0.0
    %260 = vmatprep.subr.mxu0 0.0
    %261 = vmatpush1.msra.mxu0 0.0
    %262 = vmatprep.subr.mxu0 0.0
    %263 = vmatpush1.msra.mxu0 0.0
    %264 = vmatprep.subr.mxu0 0.0
    %265 = vmatpush1.msra.mxu0 0.0
    %266 = vmatprep.subr.mxu0 0.0
    %267 = vmatpush1.msra.mxu0 0.0
    %268 = vmatprep.subr.mxu0 0.0
    %269 = vmatpush1.msra.mxu0 0.0
    %270 = vmatprep.subr.mxu0 0.0
    %271 = vmatpush1.msra.mxu0 0.0
    %272 = vmatprep.subr.mxu0 0.0
    %273 = vmatpush1.msra.mxu0 0.0
    %274 = vmatprep.subr.mxu0 0.0
    %275 = vmatpush1.msra.mxu0 0.0
    %276 = vmatprep.subr.mxu0 0.0
    %277 = vmatpush1.msra.mxu0 0.0
    %278 = vmatprep.subr.mxu0 0.0
    %279 = vmatpush1.msra.mxu0 0.0
    %280 = vmatprep.subr.mxu0 0.0
    %281 = vmatpush1.msra.mxu0 0.0
    %282 = vmatprep.subr.mxu0 0.0
    %283 = vmatpush1.msra.mxu0 0.0
    %284 = vmatprep.subr.mxu0 0.0
    %285 = vmatpush1.msra.mxu0 0.0
    %286 = vmatprep.subr.mxu0 0.0
    %287 = vmatpush1.msra.mxu0 0.0
    %288 = vmatprep.subr.mxu0 0.0
    %289 = vmatpush1.msra.mxu0 0.0
    %290 = vmatprep.subr.mxu0 0.0
    %291 = vmatpush1.msra.mxu0 0.0
    %292 = vmatprep.subr.mxu0 0.0
    %293 = vmatpush1.msra.mxu0 0.0
    %294 = vmatprep.subr.mxu0 0.0
    %295 = vmatpush1.msra.mxu0 0.0
    %296 = vmatprep.subr.mxu0 0.0
    %297 = vmatpush1.msra.mxu0 0.0
    %298 = vmatprep.subr.mxu0 0.0
    %299 = vmatpush1.msra.mxu0 0.0
    %300 = vmatprep.subr.mxu0 0.0
    %301 = vmatpush1.msra.mxu0 0.0
    %302 = vmatprep.subr.mxu0 0.0
    %303 = vmatpush1.msra.mxu0 0.0
    %304 = vmatprep.subr.mxu0 0.0
    %305 = vmatpush1.msra.mxu0 0.0
    %306 = vmatprep.mubr.f32.mxu0 0.0
    %v307 = vand.u32 %v82, 4294901760
    %v308 = vsub.f32 %v82, %v307
    %309 = vmatmul.mubr.f32.gmra.mrb[0].mxu0 %v308
    %v310 = vpop.f32.mrb[0].mxu0
    %v311 = vadd.f32 %v237, %v310
    %v312 = vpop.f32.mrb[0].mxu0
    %313 = vdwg.mxu0
    %314 = vmatprep.subr.mxu0 0.0
    %v315 = vand.u32 %v86, 4294901760
    %316 = vmatpush1.msra.mxu0 %v315
    %317 = vmatprep.subr.mxu0 0.0
    %318 = vmatpush1.msra.mxu0 0.0
    %319 = vmatprep.subr.mxu0 0.0
    %320 = vmatpush1.msra.mxu0 0.0
    %321 = vmatprep.subr.mxu0 0.0
    %322 = vmatpush1.msra.mxu0 0.0
    %323 = vmatprep.subr.mxu0 0.0
    %324 = vmatpush1.msra.mxu0 0.0
    %325 = vmatprep.subr.mxu0 0.0
    %326 = vmatpush1.msra.mxu0 0.0
    %327 = vmatprep.subr.mxu0 0.0
    %328 = vmatpush1.msra.mxu0 0.0
    %329 = vmatprep.subr.mxu0 0.0
    %330 = vmatpush1.msra.mxu0 0.0
    %331 = vmatprep.subr.mxu0 0.0
    %332 = vmatpush1.msra.mxu0 0.0
    %333 = vmatprep.subr.mxu0 0.0
    %334 = vmatpush1.msra.mxu0 0.0
    %335 = vmatprep.subr.mxu0 0.0
    %336 = vmatpush1.msra.mxu0 0.0
    %337 = vmatprep.subr.mxu0 0.0
    %338 = vmatpush1.msra.mxu0 0.0
    %339 = vmatprep.subr.mxu0 0.0
    %340 = vmatpush1.msra.mxu0 0.0
    %341 = vmatprep.subr.mxu0 0.0
    %342 = vmatpush1.msra.mxu0 0.0
    %343 = vmatprep.subr.mxu0 0.0
    %344 = vmatpush1.msra.mxu0 0.0
    %345 = vmatprep.subr.mxu0 0.0
    %346 = vmatpush1.msra.mxu0 0.0
    %347 = vmatprep.subr.mxu0 0.0
    %348 = vmatpush1.msra.mxu0 0.0
    %349 = vmatprep.subr.mxu0 0.0
    %350 = vmatpush1.msra.mxu0 0.0
    %351 = vmatprep.subr.mxu0 0.0
    %352 = vmatpush1.msra.mxu0 0.0
    %353 = vmatprep.subr.mxu0 0.0
    %354 = vmatpush1.msra.mxu0 0.0
    %355 = vmatprep.subr.mxu0 0.0
    %356 = vmatpush1.msra.mxu0 0.0
    %357 = vmatprep.subr.mxu0 0.0
    %358 = vmatpush1.msra.mxu0 0.0
    %359 = vmatprep.subr.mxu0 0.0
    %360 = vmatpush1.msra.mxu0 0.0
    %361 = vmatprep.subr.mxu0 0.0
    %362 = vmatpush1.msra.mxu0 0.0
    %363 = vmatprep.subr.mxu0 0.0
    %364 = vmatpush1.msra.mxu0 0.0
    %365 = vmatprep.subr.mxu0 0.0
    %366 = vmatpush1.msra.mxu0 0.0
    %367 = vmatprep.subr.mxu0 0.0
    %368 = vmatpush1.msra.mxu0 0.0
    %369 = vmatprep.subr.mxu0 0.0
    %370 = vmatpush1.msra.mxu0 0.0
    %371 = vmatprep.subr.mxu0 0.0
    %372 = vmatpush1.msra.mxu0 0.0
    %373 = vmatprep.subr.mxu0 0.0
    %374 = vmatpush1.msra.mxu0 0.0
    %375 = vmatprep.subr.mxu0 0.0
    %376 = vmatpush1.msra.mxu0 0.0
    %377 = vmatprep.subr.mxu0 0.0
    %378 = vmatpush1.msra.mxu0 0.0
    %379 = vmatprep.mubr.f32.mxu0 0.0
    %v380 = vand.u32 %v82, 4294901760
    %v381 = vsub.f32 %v82, %v380
    %v382 = vand.u32 %v381, 4294901760
    %383 = vmatmul.mubr.f32.gmra.mrb[0].mxu0 %v382
    %v384 = vpop.f32.mrb[0].mxu0
    %v385 = vadd.f32 %v311, %v384
    %v386 = vpop.f32.mrb[0].mxu0
    %387 = vdwg.mxu0
    %388 = vmatprep.subr.mxu0 0.0
    %v389 = vand.u32 %v86, 4294901760
    %v390 = vsub.f32 %v86, %v389
    %v391 = vand.u32 %v390, 4294901760
    %392 = vmatpush1.msra.mxu0 %v391
    %393 = vmatprep.subr.mxu0 0.0
    %394 = vmatpush1.msra.mxu0 0.0
    %395 = vmatprep.subr.mxu0 0.0
    %396 = vmatpush1.msra.mxu0 0.0
    %397 = vmatprep.subr.mxu0 0.0
    %398 = vmatpush1.msra.mxu0 0.0
    %399 = vmatprep.subr.mxu0 0.0
    %400 = vmatpush1.msra.mxu0 0.0
    %401 = vmatprep.subr.mxu0 0.0
    %402 = vmatpush1.msra.mxu0 0.0
    %403 = vmatprep.subr.mxu0 0.0
    %404 = vmatpush1.msra.mxu0 0.0
    %405 = vmatprep.subr.mxu0 0.0
    %406 = vmatpush1.msra.mxu0 0.0
    %407 = vmatprep.subr.mxu0 0.0
    %408 = vmatpush1.msra.mxu0 0.0
    %409 = vmatprep.subr.mxu0 0.0
    %410 = vmatpush1.msra.mxu0 0.0
    %411 = vmatprep.subr.mxu0 0.0
    %412 = vmatpush1.msra.mxu0 0.0
    %413 = vmatprep.subr.mxu0 0.0
    %414 = vmatpush1.msra.mxu0 0.0
    %415 = vmatprep.subr.mxu0 0.0
    %416 = vmatpush1.msra.mxu0 0.0
    %417 = vmatprep.subr.mxu0 0.0
    %418 = vmatpush1.msra.mxu0 0.0
    %419 = vmatprep.subr.mxu0 0.0
    %420 = vmatpush1.msra.mxu0 0.0
    %421 = vmatprep.subr.mxu0 0.0
    %422 = vmatpush1.msra.mxu0 0.0
    %423 = vmatprep.subr.mxu0 0.0
    %424 = vmatpush1.msra.mxu0 0.0
    %425 = vmatprep.subr.mxu0 0.0
    %426 = vmatpush1.msra.mxu0 0.0
    %427 = vmatprep.subr.mxu0 0.0
    %428 = vmatpush1.msra.mxu0 0.0
    %429 = vmatprep.subr.mxu0 0.0
    %430 = vmatpush1.msra.mxu0 0.0
    %431 = vmatprep.subr.mxu0 0.0
    %432 = vmatpush1.msra.mxu0 0.0
    %433 = vmatprep.subr.mxu0 0.0
    %434 = vmatpush1.msra.mxu0 0.0
    %435 = vmatprep.subr.mxu0 0.0
    %436 = vmatpush1.msra.mxu0 0.0
    %437 = vmatprep.subr.mxu0 0.0
    %438 = vmatpush1.msra.mxu0 0.0
    %439 = vmatprep.subr.mxu0 0.0
    %440 = vmatpush1.msra.mxu0 0.0
    %441 = vmatprep.subr.mxu0 0.0
    %442 = vmatpush1.msra.mxu0 0.0
    %443 = vmatprep.subr.mxu0 0.0
    %444 = vmatpush1.msra.mxu0 0.0
    %445 = vmatprep.subr.mxu0 0.0
    %446 = vmatpush1.msra.mxu0 0.0
    %447 = vmatprep.subr.mxu0 0.0
    %448 = vmatpush1.msra.mxu0 0.0
    %449 = vmatprep.subr.mxu0 0.0
    %450 = vmatpush1.msra.mxu0 0.0
    %451 = vmatprep.subr.mxu0 0.0
    %452 = vmatpush1.msra.mxu0 0.0
    %453 = vmatprep.subr.mxu0 0.0
    %454 = vmatpush1.msra.mxu0 0.0
    %455 = vmatprep.mubr.f32.mxu0 0.0
    %v456 = vand.u32 %v82, 4294901760
    %457 = vmatmul.mubr.f32.gmra.mrb[0].mxu0 %v456
    %v458 = vpop.f32.mrb[0].mxu0
    %v459 = vadd.f32 %v385, %v458
    %v460 = vpop.f32.mrb[0].mxu0
    %461 = vdwg.mxu0
    %462 = vmatprep.subr.mxu0 0.0
    %v463 = vand.u32 %v86, 4294901760
    %464 = vmatpush1.msra.mxu0 %v463
    %465 = vmatprep.subr.mxu0 0.0
    %466 = vmatpush1.msra.mxu0 0.0
    %467 = vmatprep.subr.mxu0 0.0
    %468 = vmatpush1.msra.mxu0 0.0
    %469 = vmatprep.subr.mxu0 0.0
    %470 = vmatpush1.msra.mxu0 0.0
    %471 = vmatprep.subr.mxu0 0.0
    %472 = vmatpush1.msra.mxu0 0.0
    %473 = vmatprep.subr.mxu0 0.0
    %474 = vmatpush1.msra.mxu0 0.0
    %475 = vmatprep.subr.mxu0 0.0
    %476 = vmatpush1.msra.mxu0 0.0
    %477 = vmatprep.subr.mxu0 0.0
    %478 = vmatpush1.msra.mxu0 0.0
    %479 = vmatprep.subr.mxu0 0.0
    %480 = vmatpush1.msra.mxu0 0.0
    %481 = vmatprep.subr.mxu0 0.0
    %482 = vmatpush1.msra.mxu0 0.0
    %483 = vmatprep.subr.mxu0 0.0
    %484 = vmatpush1.msra.mxu0 0.0
    %485 = vmatprep.subr.mxu0 0.0
    %486 = vmatpush1.msra.mxu0 0.0
    %487 = vmatprep.subr.mxu0 0.0
    %488 = vmatpush1.msra.mxu0 0.0
    %489 = vmatprep.subr.mxu0 0.0
    %490 = vmatpush1.msra.mxu0 0.0
    %491 = vmatprep.subr.mxu0 0.0
    %492 = vmatpush1.msra.mxu0 0.0
    %493 = vmatprep.subr.mxu0 0.0
    %494 = vmatpush1.msra.mxu0 0.0
    %495 = vmatprep.subr.mxu0 0.0
    %496 = vmatpush1.msra.mxu0 0.0
    %497 = vmatprep.subr.mxu0 0.0
    %498 = vmatpush1.msra.mxu0 0.0
    %499 = vmatprep.subr.mxu0 0.0
    %500 = vmatpush1.msra.mxu0 0.0
    %501 = vmatprep.subr.mxu0 0.0
    %502 = vmatpush1.msra.mxu0 0.0
    %503 = vmatprep.subr.mxu0 0.0
    %504 = vmatpush1.msra.mxu0 0.0
    %505 = vmatprep.subr.mxu0 0.0
    %506 = vmatpush1.msra.mxu0 0.0
    %507 = vmatprep.subr.mxu0 0.0
    %508 = vmatpush1.msra.mxu0 0.0
    %509 = vmatprep.subr.mxu0 0.0
    %510 = vmatpush1.msra.mxu0 0.0
    %511 = vmatprep.subr.mxu0 0.0
    %512 = vmatpush1.msra.mxu0 0.0
    %513 = vmatprep.subr.mxu0 0.0
    %514 = vmatpush1.msra.mxu0 0.0
    %515 = vmatprep.subr.mxu0 0.0
    %516 = vmatpush1.msra.mxu0 0.0
    %517 = vmatprep.subr.mxu0 0.0
    %518 = vmatpush1.msra.mxu0 0.0
    %519 = vmatprep.subr.mxu0 0.0
    %520 = vmatpush1.msra.mxu0 0.0
    %521 = vmatprep.subr.mxu0 0.0
    %522 = vmatpush1.msra.mxu0 0.0
    %523 = vmatprep.subr.mxu0 0.0
    %524 = vmatpush1.msra.mxu0 0.0
    %525 = vmatprep.subr.mxu0 0.0
    %526 = vmatpush1.msra.mxu0 0.0
    %527 = vmatprep.mubr.f32.mxu0 0.0
    %v528 = vand.u32 %v82, 4294901760
    %529 = vmatmul.mubr.f32.gmra.mrb[0].mxu0 %v528
    %v530 = vpop.f32.mrb[0].mxu0
    %v531 = vadd.f32 %v459, %v530
    %v532 = vpop.f32.mrb[0].mxu0
    %533 = vdwg.mxu0
    %v534 = vld [vmem:[#allocation5] sm:$0xff]
    %v535 = vmul.f32 %v534, %v531
    %536 = vst [vmem:[#allocation7] sm:$0xff] %v535
    // Predicated region
    $region18: #{tpu_custom_call.1} parent=1 // pred_check
      _
    $region19: #{tpu_custom_call.1} parent=1 // pred_check_branch
      %538 = sbr.rel (0) target = $region21
    $region20: #{tpu_custom_call.1} parent=1 // pred_region
      %s540 = ssub.s32 128, 128
      %541 = vsyncadd [#allocation4], %s540
      %s543 = sshll.u32 [#allocation7], 4
      %s544 = int_to_ptr.vmem [resolvable:$true] %s543
      %546 = dma.vmem_to_hbm [thread:$0]  %s544, 128, %s2, [#allocation4]
    $region21: #{tpu_custom_call.1} parent=1 // pred_fallthru
      _
    // Predicated region
    $region22: #{tpu_custom_call.1} parent=1 // pred_check
      _
    $region23: #{tpu_custom_call.1} parent=1 // pred_check_branch
      %548 = sbr.rel (0) target = $region25
    $region24: #{tpu_custom_call.1} parent=1 // pred_region
      %549 = dma.done [#allocation4], 128
    $region25: #{tpu_custom_call.1} parent=1 // pred_fallthru
      _
    %550 = vsyncpa [#allocation3], 1
    %551 = vsyncpa [#allocation6], 1
    %552 = vsyncpa [#allocation4], 1

</llo_original>
